<compile_context>
chip_gen: v5e
topology: v5e:2x2
jax: 0.10.0
libtpu: 0.0.40
codegen_flags: <defaults>
</compile_context>

<pallas_src>
import jax
import jax.numpy as jnp
from jax import lax
from jax.experimental import pallas as pl
from jax.experimental.pallas import tpu as pltpu


def sa_layer_kernel(
    x_ref,        # (1, C, N)  input features for this batch element (f32)
    wqk_ref,      # (C, C//4)  shared q/k conv weight, pre-transposed, bf16
    wv_ref,       # (C, C)     v conv weight, pre-transposed, bf16
    bv_ref,       # (1, C)     v conv bias (f32)
    wt_ref,       # (C, C)     trans conv weight, pre-transposed, BN-folded, bf16
    bt_ref,       # (1, C)     trans conv bias with BN affine folded in (f32)
    out_ref,      # (1, C, N)  output (f32)
):
    x_cn = x_ref[0]                                    # (C, N) f32
    x_bf = x_cn.T.astype(jnp.bfloat16)                 # (N, C) bf16 (on-chip transpose)

    # 1x1-conv projections: x @ W  (weights already laid out (C_in, C_out)).
    xq = jnp.dot(x_bf, wqk_ref[...],
                 preferred_element_type=jnp.float32)                 # (N, C//4)
    xv = jnp.dot(x_bf, wv_ref[...],
                 preferred_element_type=jnp.float32) + bv_ref[...]   # (N, C)

    # energy[n, m] = q_n . k_m ; q/k share weights (no bias) => symmetric.
    xq_bf = xq.astype(jnp.bfloat16)
    energy = lax.dot_general(xq_bf, xq_bf, (((1,), (1,)), ((), ())),
                             preferred_element_type=jnp.float32)     # (N, N) f32

    # softmax over the key axis.  Subtracting a single global max (a constant)
    # leaves each row's softmax unchanged, is overflow-safe, and keeps P
    # symmetric (needed for the transpose-free bmm below).
    p = jnp.exp(energy - jnp.max(energy, keepdims=True))             # (N, N) f32
    inv_rowsum = pl.reciprocal(jnp.sum(p, axis=1, keepdims=True),
                               approx=True)                          # (N, 1)

    # torch: x_r = bmm(x_v, attention), i.e.
    #   x_r[n] = sum_m att[m, n] * x_v[m] = sum_m P[n, m] * x_v[m] / rowsum[m]
    # (P symmetric) -> plain MXU matmul with the normalization moved onto the
    # NxC tensor instead of the NxN one.
    xv_scaled = (xv * inv_rowsum).astype(jnp.bfloat16)               # (N, C)
    xr = jnp.dot(p.astype(jnp.bfloat16), xv_scaled,
                 preferred_element_type=jnp.float32)                 # (N, C)

    # x + relu(after_norm(trans_conv(x_r)))  -- BN affine folded into wt/bt.
    t = jnp.dot(xr.astype(jnp.bfloat16), wt_ref[...],
                preferred_element_type=jnp.float32) + bt_ref[...]
    t = jnp.maximum(t, 0.0)                                          # (N, C)

    # Residual add and write back in the PyTorch (C, N) layout (on-chip
    # transpose instead of an extra HBM round trip in the wrapper).
    out_ref[0] = (x_cn + t.T).astype(out_ref.dtype)


def sa_layer(x_bcn, p):
    """x_bcn: (B, C, N) float32 -> (B, C, N) float32 (matches SA_Layer.forward)."""
    B, C, N = x_bcn.shape
    C4 = C // 4

    # One-time weight prep (outside the kernel): transpose to (C_in, C_out),
    # fold the eval-mode BatchNorm affine into trans_conv, cast matmul weights
    # to bf16.
    wqk_t = jnp.transpose(p["wqk"]).astype(jnp.bfloat16)               # (C, C//4)
    wv_t = jnp.transpose(p["wv"]).astype(jnp.bfloat16)                 # (C, C)
    wt_fold = (jnp.transpose(p["wt"]) * p["abn"]).astype(jnp.bfloat16) # (C, C)
    bt_fold = (p["bt"] * p["abn"] + p["bbn"]).astype(jnp.float32)      # (1, C)

    def full(a):
        return pl.BlockSpec(a.shape, lambda b: (0,) * a.ndim)

    flops = B * (2 * N * C * C4        # q/k projection (shared weight, done once)
                 + 2 * N * C * C       # v projection
                 + 2 * N * N * C4      # energy
                 + 2 * N * N * C       # P @ x_v
                 + 2 * N * C * C)      # trans conv (BN folded)
    bytes_accessed = (4 * 2 * B * C * N                 # x in + out (f32)
                      + 2 * (C * C4 + 2 * C * C)        # bf16 weights
                      + 4 * 2 * C)                      # biases (f32)
    cost = pl.CostEstimate(flops=flops, transcendentals=B * N * N,
                           bytes_accessed=bytes_accessed)

    return pl.pallas_call(
        sa_layer_kernel,
        out_shape=jax.ShapeDtypeStruct((B, C, N), x_bcn.dtype),
        grid=(B,),
        in_specs=[
            pl.BlockSpec((1, C, N), lambda b: (b, 0, 0)),   # x
            full(wqk_t), full(wv_t), full(p["bv"]),
            full(wt_fold), full(bt_fold),
        ],
        out_specs=pl.BlockSpec((1, C, N), lambda b: (b, 0, 0)),
        compiler_params=pltpu.CompilerParams(
            dimension_semantics=("parallel",),
            vmem_limit_bytes=48 * 1024 * 1024),
        cost_estimate=cost,
    )(x_bcn, wqk_t, wv_t, p["bv"], wt_fold, bt_fold)


# ----------------------- deterministic parameter setup -----------------------

def _bn_affine(key, C, eps=1e-5):
    k1, k2, k3, k4 = jax.random.split(key, 4)
    gamma = 1.0 + 0.1 * jax.random.normal(k1, (C,), jnp.float32)
    beta = 0.1 * jax.random.normal(k2, (C,), jnp.float32)
    mean = 0.1 * jax.random.normal(k3, (C,), jnp.float32)
    var = 0.5 + 0.5 * jnp.abs(jax.random.normal(k4, (C,), jnp.float32))
    a = gamma / jnp.sqrt(var + eps)
    b = beta - mean * a
    return a.reshape(1, C), b.reshape(1, C)


def init_params(key, C):
    C4 = C // 4
    ks = iter(jax.random.split(key, 8))
    nrm = lambda shape, s=0.1: s * jax.random.normal(next(ks), shape, jnp.float32)

    wqk = nrm((C4, C))          # shared q/k conv weight (k=1 squeezed), bias=None
    wv = nrm((C, C))            # v conv
    bv = nrm((1, C))
    wt = nrm((C, C))            # trans conv
    bt = nrm((1, C))
    abn, bbn = _bn_affine(next(ks), C)   # after_norm (eval mode, folded)
    return dict(wqk=wqk, wv=wv, bv=bv, wt=wt, bt=bt, abn=abn, bbn=bbn)


# ------------------------------ pure-JAX reference ---------------------------

def reference_forward(x_bcn, p):
    x = jnp.transpose(x_bcn, (0, 2, 1))                             # (B, N, C)
    xq = jnp.einsum("bnc,dc->bnd", x, p["wqk"])                     # (B, N, C/4)
    xv = jnp.einsum("bnc,dc->bnd", x, p["wv"]) + p["bv"]            # (B, N, C)
    e = jnp.einsum("bnd,bmd->bnm", xq, xq)                          # (B, N, N)
    att = jax.nn.softmax(e, axis=-1)
    xr = jnp.einsum("bmn,bmc->bnc", att, xv)                        # bmm(x_v, att)
    t = jnp.einsum("bnc,dc->bnd", xr, p["wt"]) + p["bt"]
    t = jnp.maximum(t * p["abn"] + p["bbn"], 0.0)
    y = x + t
    return jnp.transpose(y, (0, 2, 1))                              # (B, C, N)


if __name__ == "__main__":
    B, C, N = 2, 32, 16                  # small analogue of channels=256
    key = jax.random.PRNGKey(0)
    kx, kp = jax.random.split(key)
    x = jax.random.normal(kx, (B, C, N), dtype=jnp.float32)
    params = init_params(kp, C)

    out = jax.block_until_ready(sa_layer(x, params))
    ref = jax.block_until_ready(reference_forward(x, params))

    assert out.shape == (B, C, N), out.shape
    # Tolerance reflects bf16 MXU inputs + EUP approx reciprocal vs f32 reference.
    err = float(jnp.max(jnp.abs(out - ref)))
    assert err < 3e-2, err
    print("KERNEL_OK")
</pallas_src>

<mosaic_0001>
module attributes {stable_mosaic.version = 11 : i64} {
  func.func @sa_layer_kernel(%arg0: i32, %arg1: memref<1x32x16xf32, #tpu.memory_space<vmem>>, %arg2: memref<32x8xbf16, #tpu.memory_space<vmem>>, %arg3: memref<32x32xbf16, #tpu.memory_space<vmem>>, %arg4: memref<1x32xf32, #tpu.memory_space<vmem>>, %arg5: memref<32x32xbf16, #tpu.memory_space<vmem>>, %arg6: memref<1x32xf32, #tpu.memory_space<vmem>>, %arg7: memref<1x32x16xf32, #tpu.memory_space<vmem>>) attributes {dimension_semantics = [#tpu.dimension_semantics<parallel>], iteration_bounds = array<i64: 2>, scalar_prefetch = 0 : i64, scratch_operands = 0 : i64, tpu.core_type = #tpu.core_type<tc>, window_params = [{transform_indices = @transform_0, window_bounds = array<i64: 1, 32, 16>}, {pipeline_mode = #tpu.pipeline_mode<synchronous>, transform_indices = @transform_1, window_bounds = array<i64: 32, 8>}, {pipeline_mode = #tpu.pipeline_mode<synchronous>, transform_indices = @transform_2, window_bounds = array<i64: 32, 32>}, {pipeline_mode = #tpu.pipeline_mode<synchronous>, transform_indices = @transform_3, window_bounds = array<i64: 1, 32>}, {pipeline_mode = #tpu.pipeline_mode<synchronous>, transform_indices = @transform_4, window_bounds = array<i64: 32, 32>}, {pipeline_mode = #tpu.pipeline_mode<synchronous>, transform_indices = @transform_5, window_bounds = array<i64: 1, 32>}, {transform_indices = @transform_6, window_bounds = array<i64: 1, 32, 16>}]} {
    %c0 = arith.constant 0 : index
    %c0_0 = arith.constant 0 : index
    %c0_1 = arith.constant 0 : index
    %0 = vector.load %arg1[%c0, %c0_0, %c0_1] : memref<1x32x16xf32, #tpu.memory_space<vmem>>, vector<1x32x16xf32>
    %1 = vector.shape_cast %0 : vector<1x32x16xf32> to vector<32x16xf32>
    %2 = tpu.transpose %1, [1, 0] : vector<32x16xf32> -> vector<16x32xf32>
    %3 = arith.truncf %2 : vector<16x32xf32> to vector<16x32xbf16>
    %c0_2 = arith.constant 0 : index
    %c0_3 = arith.constant 0 : index
    %4 = vector.load %arg2[%c0_2, %c0_3] : memref<32x8xbf16, #tpu.memory_space<vmem>>, vector<32x8xbf16>
    %cst = arith.constant dense<0.000000e+00> : vector<16x8xf32>
    %5 = tpu.matmul %3, %4, %cst {dimension_numbers = #tpu.dot_dimension_numbers<[1], [0], [0], [1], [0, 0, 1, 1], [], []>} : vector<16x32xbf16>, vector<32x8xbf16>, vector<16x8xf32> -> vector<16x8xf32>
    %c0_4 = arith.constant 0 : index
    %c0_5 = arith.constant 0 : index
    %6 = vector.load %arg3[%c0_4, %c0_5] : memref<32x32xbf16, #tpu.memory_space<vmem>>, vector<32x32xbf16>
    %cst_6 = arith.constant dense<0.000000e+00> : vector<16x32xf32>
    %7 = tpu.matmul %3, %6, %cst_6 {dimension_numbers = #tpu.dot_dimension_numbers<[1], [0], [0], [1], [0, 0, 1, 1], [], []>} : vector<16x32xbf16>, vector<32x32xbf16>, vector<16x32xf32> -> vector<16x32xf32>
    %c0_7 = arith.constant 0 : index
    %c0_8 = arith.constant 0 : index
    %8 = vector.load %arg4[%c0_7, %c0_8] : memref<1x32xf32, #tpu.memory_space<vmem>>, vector<1x32xf32>
    %9 = vector.broadcast %8 : vector<1x32xf32> to vector<16x32xf32>
    %10 = arith.addf %7, %9 : vector<16x32xf32>
    %11 = arith.truncf %5 : vector<16x8xf32> to vector<16x8xbf16>
    %cst_9 = arith.constant dense<0.000000e+00> : vector<16x16xf32>
    %12 = tpu.matmul %11, %11, %cst_9 {dimension_numbers = #tpu.dot_dimension_numbers<[1], [1], [0], [0], [0, 0, 1, 0], [], []>} : vector<16x8xbf16>, vector<16x8xbf16>, vector<16x16xf32> -> vector<16x16xf32>
    %13 = vector.shape_cast %12 : vector<16x16xf32> to vector<1x16x16xf32>
    %cst_10 = arith.constant dense<0xFF800000> : vector<1xf32>
    %14 = vector.multi_reduction <maximumf>, %13, %cst_10 [1, 2] : vector<1x16x16xf32> to vector<1xf32>
    %15 = vector.shape_cast %14 : vector<1xf32> to vector<1x1x1xf32>
    %16 = vector.extract %15[0, 0, 0] : f32 from vector<1x1x1xf32>
    %17 = vector.broadcast %16 : f32 to vector<1x1xf32>
    %18 = vector.broadcast %17 : vector<1x1xf32> to vector<16x16xf32>
    %19 = arith.subf %12, %18 : vector<16x16xf32>
    %20 = math.exp %19 : vector<16x16xf32>
    %cst_11 = arith.constant dense<0.000000e+00> : vector<16xf32>
    %21 = vector.multi_reduction <add>, %20, %cst_11 [1] : vector<16x16xf32> to vector<16xf32>
    %22 = vector.shape_cast %21 : vector<16xf32> to vector<16x1xf32>
    %23 = tpu.reciprocal %22 {approx = true} : vector<16x1xf32> -> vector<16x1xf32>
    %24 = vector.broadcast %23 : vector<16x1xf32> to vector<16x32xf32>
    %25 = arith.mulf %10, %24 : vector<16x32xf32>
    %26 = arith.truncf %25 : vector<16x32xf32> to vector<16x32xbf16>
    %27 = arith.truncf %20 : vector<16x16xf32> to vector<16x16xbf16>
    %cst_12 = arith.constant dense<0.000000e+00> : vector<16x32xf32>
    %28 = tpu.matmul %27, %26, %cst_12 {dimension_numbers = #tpu.dot_dimension_numbers<[1], [0], [0], [1], [0, 0, 1, 1], [], []>} : vector<16x16xbf16>, vector<16x32xbf16>, vector<16x32xf32> -> vector<16x32xf32>
    %29 = arith.truncf %28 : vector<16x32xf32> to vector<16x32xbf16>
    %c0_13 = arith.constant 0 : index
    %c0_14 = arith.constant 0 : index
    %30 = vector.load %arg5[%c0_13, %c0_14] : memref<32x32xbf16, #tpu.memory_space<vmem>>, vector<32x32xbf16>
    %cst_15 = arith.constant dense<0.000000e+00> : vector<16x32xf32>
    %31 = tpu.matmul %29, %30, %cst_15 {dimension_numbers = #tpu.dot_dimension_numbers<[1], [0], [0], [1], [0, 0, 1, 1], [], []>} : vector<16x32xbf16>, vector<32x32xbf16>, vector<16x32xf32> -> vector<16x32xf32>
    %c0_16 = arith.constant 0 : index
    %c0_17 = arith.constant 0 : index
    %32 = vector.load %arg6[%c0_16, %c0_17] : memref<1x32xf32, #tpu.memory_space<vmem>>, vector<1x32xf32>
    %33 = vector.broadcast %32 : vector<1x32xf32> to vector<16x32xf32>
    %34 = arith.addf %31, %33 : vector<16x32xf32>
    %cst_18 = arith.constant 0.000000e+00 : f32
    %35 = vector.broadcast %cst_18 : f32 to vector<16x32xf32>
    %36 = arith.maximumf %34, %35 : vector<16x32xf32>
    %37 = tpu.transpose %36, [1, 0] : vector<16x32xf32> -> vector<32x16xf32>
    %38 = arith.addf %1, %37 : vector<32x16xf32>
    %c0_19 = arith.constant 0 : index
    %c0_20 = arith.constant 0 : index
    %c0_21 = arith.constant 0 : index
    %39 = vector.load %arg7[%c0_19, %c0_20, %c0_21] : memref<1x32x16xf32, #tpu.memory_space<vmem>>, vector<1x32x16xf32>
    %40 = vector.shape_cast %39 : vector<1x32x16xf32> to vector<32x16xf32>
    %41 = vector.shape_cast %38 : vector<32x16xf32> to vector<1x32x16xf32>
    tpu.vector_store %arg7[%c0_19, %c0_20, %c0_21], %41 {strides = array<i32>} : memref<1x32x16xf32, #tpu.memory_space<vmem>>, vector<1x32x16xf32>,
    return
  }
  func.func @transform_0(%arg0: i32) -> (i32, i32, i32) {
    %c0_i32 = arith.constant 0 : i32
    %c0_i32_0 = arith.constant 0 : i32
    %c0_i32_1 = arith.constant 0 : i32
    return %arg0, %c0_i32, %c0_i32_0 : i32, i32, i32
  }
  func.func @transform_1(%arg0: i32) -> (i32, i32) {
    %c0_i32 = arith.constant 0 : i32
    %c0_i32_0 = arith.constant 0 : i32
    %c0_i32_1 = arith.constant 0 : i32
    return %c0_i32, %c0_i32_0 : i32, i32
  }
  func.func @transform_2(%arg0: i32) -> (i32, i32) {
    %c0_i32 = arith.constant 0 : i32
    %c0_i32_0 = arith.constant 0 : i32
    %c0_i32_1 = arith.constant 0 : i32
    return %c0_i32, %c0_i32_0 : i32, i32
  }
  func.func @transform_3(%arg0: i32) -> (i32, i32) {
    %c0_i32 = arith.constant 0 : i32
    %c0_i32_0 = arith.constant 0 : i32
    %c0_i32_1 = arith.constant 0 : i32
    return %c0_i32, %c0_i32_0 : i32, i32
  }
  func.func @transform_4(%arg0: i32) -> (i32, i32) {
    %c0_i32 = arith.constant 0 : i32
    %c0_i32_0 = arith.constant 0 : i32
    %c0_i32_1 = arith.constant 0 : i32
    return %c0_i32, %c0_i32_0 : i32, i32
  }
  func.func @transform_5(%arg0: i32) -> (i32, i32) {
    %c0_i32 = arith.constant 0 : i32
    %c0_i32_0 = arith.constant 0 : i32
    %c0_i32_1 = arith.constant 0 : i32
    return %c0_i32, %c0_i32_0 : i32, i32
  }
  func.func @transform_6(%arg0: i32) -> (i32, i32, i32) {
    %c0_i32 = arith.constant 0 : i32
    %c0_i32_0 = arith.constant 0 : i32
    %c0_i32_1 = arith.constant 0 : i32
    return %arg0, %c0_i32, %c0_i32_0 : i32, i32, i32
  }
}

</mosaic_0001>

<llo_original>
// kernel: tpu_custom_call.1
$region0: #{tpu_custom_call.1}
  #allocation0 [shape = 'u32[]', space=smem, size = 0x4, offset = 0x4, fixed_abs, tag = 'smem constant byte address 0x4 - core index']
  #allocation1 [shape = 'u32[72,128]{1,0:T(1,128)}', space=vmem, size = 0x9000, scoped, tag = 'internal scratch']
  %s0 = inlined_call_operand.vmem [shape: f32[2,32,16], index: 0, kind: input, shape index: {}]
  %s1 = inlined_call_operand.vmem [shape: bf16[32,8], index: 1, kind: input, shape index: {}]
  %s2 = inlined_call_operand.vmem [shape: bf16[32,32], index: 2, kind: input, shape index: {}]
  %s3 = inlined_call_operand.vmem [shape: f32[1,32], index: 3, kind: input, shape index: {}]
  %s4 = inlined_call_operand.vmem [shape: bf16[32,32], index: 4, kind: input, shape index: {}]
  %s5 = inlined_call_operand.vmem [shape: f32[1,32], index: 5, kind: input, shape index: {}]
  %s6 = inlined_call_operand.vmem [shape: f32[2,32,16], index: 6, kind: output, shape index: {}]
  %s7 = sld [smem:[#allocation0]]
  $region57: #{tpu_custom_call.1} parent=0
    _
  %s9 = ssub.s32 1, %s7
  %s10 = scalar_select 0, %s9, %s7
  loop: start=0, step=1, limit=4
  $region2: #{tpu_custom_call.1} parent=0 // loop_pre_header
    _
  $region3: #{tpu_custom_call.1} parent=0 // loop_header
    %s12 = sphi 0, %s16
    %p13 = scmp.ge.s32.totalorder %s12, 4
    %s22 = sphi 0, %s24
    %s25 = sphi 0, %s22
    %s26 = sphi 0, %s25
    %s42 = sphi 0, %s26
    %s46 = sphi 0, %s46
    %s48 = sphi 0, %s46
    %s49 = sphi 0, %s48
    %s63 = sphi 0, %s49
    %s67 = sphi 0, %s67
    %s69 = sphi 0, %s67
    %s70 = sphi 0, %s69
    %s84 = sphi 0, %s70
    %s88 = sphi 0, %s88
    %s90 = sphi 0, %s88
    %s91 = sphi 0, %s90
    %s105 = sphi 0, %s91
    %s109 = sphi 0, %s109
    %s111 = sphi 0, %s109
    %s112 = sphi 0, %s111
    %s126 = sphi 0, %s112
    %s130 = sphi 0, %s130
    %s132 = sphi 0, %s130
    %s133 = sphi 0, %s132
    %s147 = sphi 0, %s133
    %s153 = sphi 0, %s155
    %s156 = sphi 0, %s153
    %s157 = sphi 0, %s156
    %s173 = sphi 0, %s157
  $region4: #{tpu_custom_call.1} parent=0 // loop_header_branch
    %15 = sbr.rel (%p13) target = $region8
  $region5: #{tpu_custom_call.1} parent=0 // loop_body
    %s17 = ssub.s32 %s12, 1
    %s18 = ssub.s32 %s12, 2
    %s19 = sadd.s32 %s12, 1
    %s20 = ssub.s32 %s12, %s19
    %p21 = scmp.eq.s32.totalorder %s20, 0
    %s23 = sadd.s32 %s22, 1
    %s24 = scalar_select %p21, %s22, %s23
    %p27 = pneg %p21
    %p28 = scmp.eq.s32.totalorder %s12, 1
    %p29 = por %p27, %p28
    %p30 = scmp.ne.s32.totalorder %s22, %s25
    %p31 = scmp.eq.s32.totalorder %s12, 0
    %p32 = por %p30, %p31
    %p33 = scmp.ne.s32.totalorder %s22, %s25
    %p34 = scmp.eq.s32.totalorder %s17, 1
    %p35 = por %p33, %p34
    %p36 = scmp.ne.s32.totalorder %s25, %s26
    %p37 = scmp.eq.s32.totalorder %s17, 0
    %p38 = por %p36, %p37
    %p39 = scmp.ne.s32.totalorder %s25, %s26
    %p40 = scmp.eq.s32.totalorder %s18, 1
    %p41 = por %p39, %p40
    %p43 = scmp.ne.s32.totalorder %s26, %s42
    %p44 = scmp.eq.s32.totalorder %s18, 0
    %p45 = por %p43, %p44
    %s47 = sadd.s32 %s46, 1
    %p50 = scmp.eq.s32.totalorder %s12, 1
    %p51 = scmp.ne.s32.totalorder %s46, %s48
    %p52 = scmp.eq.s32.totalorder %s12, 0
    %p53 = por %p51, %p52
    %p54 = scmp.ne.s32.totalorder %s46, %s48
    %p55 = scmp.eq.s32.totalorder %s17, 1
    %p56 = por %p54, %p55
    %p57 = scmp.ne.s32.totalorder %s48, %s49
    %p58 = scmp.eq.s32.totalorder %s17, 0
    %p59 = por %p57, %p58
    %p60 = scmp.ne.s32.totalorder %s48, %s49
    %p61 = scmp.eq.s32.totalorder %s18, 1
    %p62 = por %p60, %p61
    %p64 = scmp.ne.s32.totalorder %s49, %s63
    %p65 = scmp.eq.s32.totalorder %s18, 0
    %p66 = por %p64, %p65
    %s68 = sadd.s32 %s67, 1
    %p71 = scmp.eq.s32.totalorder %s12, 1
    %p72 = scmp.ne.s32.totalorder %s67, %s69
    %p73 = scmp.eq.s32.totalorder %s12, 0
    %p74 = por %p72, %p73
    %p75 = scmp.ne.s32.totalorder %s67, %s69
    %p76 = scmp.eq.s32.totalorder %s17, 1
    %p77 = por %p75, %p76
    %p78 = scmp.ne.s32.totalorder %s69, %s70
    %p79 = scmp.eq.s32.totalorder %s17, 0
    %p80 = por %p78, %p79
    %p81 = scmp.ne.s32.totalorder %s69, %s70
    %p82 = scmp.eq.s32.totalorder %s18, 1
    %p83 = por %p81, %p82
    %p85 = scmp.ne.s32.totalorder %s70, %s84
    %p86 = scmp.eq.s32.totalorder %s18, 0
    %p87 = por %p85, %p86
    %s89 = sadd.s32 %s88, 1
    %p92 = scmp.eq.s32.totalorder %s12, 1
    %p93 = scmp.ne.s32.totalorder %s88, %s90
    %p94 = scmp.eq.s32.totalorder %s12, 0
    %p95 = por %p93, %p94
    %p96 = scmp.ne.s32.totalorder %s88, %s90
    %p97 = scmp.eq.s32.totalorder %s17, 1
    %p98 = por %p96, %p97
    %p99 = scmp.ne.s32.totalorder %s90, %s91
    %p100 = scmp.eq.s32.totalorder %s17, 0
    %p101 = por %p99, %p100
    %p102 = scmp.ne.s32.totalorder %s90, %s91
    %p103 = scmp.eq.s32.totalorder %s18, 1
    %p104 = por %p102, %p103
    %p106 = scmp.ne.s32.totalorder %s91, %s105
    %p107 = scmp.eq.s32.totalorder %s18, 0
    %p108 = por %p106, %p107
    %s110 = sadd.s32 %s109, 1
    %p113 = scmp.eq.s32.totalorder %s12, 1
    %p114 = scmp.ne.s32.totalorder %s109, %s111
    %p115 = scmp.eq.s32.totalorder %s12, 0
    %p116 = por %p114, %p115
    %p117 = scmp.ne.s32.totalorder %s109, %s111
    %p118 = scmp.eq.s32.totalorder %s17, 1
    %p119 = por %p117, %p118
    %p120 = scmp.ne.s32.totalorder %s111, %s112
    %p121 = scmp.eq.s32.totalorder %s17, 0
    %p122 = por %p120, %p121
    %p123 = scmp.ne.s32.totalorder %s111, %s112
    %p124 = scmp.eq.s32.totalorder %s18, 1
    %p125 = por %p123, %p124
    %p127 = scmp.ne.s32.totalorder %s112, %s126
    %p128 = scmp.eq.s32.totalorder %s18, 0
    %p129 = por %p127, %p128
    %s131 = sadd.s32 %s130, 1
    %p134 = scmp.eq.s32.totalorder %s12, 1
    %p135 = scmp.ne.s32.totalorder %s130, %s132
    %p136 = scmp.eq.s32.totalorder %s12, 0
    %p137 = por %p135, %p136
    %p138 = scmp.ne.s32.totalorder %s130, %s132
    %p139 = scmp.eq.s32.totalorder %s17, 1
    %p140 = por %p138, %p139
    %p141 = scmp.ne.s32.totalorder %s132, %s133
    %p142 = scmp.eq.s32.totalorder %s17, 0
    %p143 = por %p141, %p142
    %p144 = scmp.ne.s32.totalorder %s132, %s133
    %p145 = scmp.eq.s32.totalorder %s18, 1
    %p146 = por %p144, %p145
    %p148 = scmp.ne.s32.totalorder %s133, %s147
    %p149 = scmp.eq.s32.totalorder %s18, 0
    %p150 = por %p148, %p149
    %s151 = ssub.s32 %s12, %s19
    %p152 = scmp.eq.s32.totalorder %s151, 0
    %s154 = sadd.s32 %s153, 1
    %s155 = scalar_select %p152, %s153, %s154
    %p158 = pneg %p152
    %p159 = scmp.eq.s32.totalorder %s12, 1
    %p160 = por %p158, %p159
    %p161 = scmp.ne.s32.totalorder %s153, %s156
    %p162 = scmp.eq.s32.totalorder %s12, 0
    %p163 = por %p161, %p162
    %p164 = scmp.ne.s32.totalorder %s153, %s156
    %p165 = scmp.eq.s32.totalorder %s17, 1
    %p166 = por %p164, %p165
    %p167 = scmp.ne.s32.totalorder %s156, %s157
    %p168 = scmp.eq.s32.totalorder %s17, 0
    %p169 = por %p167, %p168
    %p170 = scmp.ne.s32.totalorder %s156, %s157
    %p171 = scmp.eq.s32.totalorder %s18, 1
    %p172 = por %p170, %p171
    %p174 = scmp.ne.s32.totalorder %s157, %s173
    %p175 = scmp.eq.s32.totalorder %s18, 0
    %p176 = por %p174, %p175
    %p177 = scmp.le.s32.totalorder 1, %s12
    %p178 = scmp.lt.s32.totalorder %s12, 3
    %p179 = pnand %p177, %p178
    %p180 = pneg %p179
    // Predicated region
    $region9: #{tpu_custom_call.1} parent=5 // pred_check
      _
    $region10: #{tpu_custom_call.1} parent=5 // pred_check_branch
      %182 = sbr.rel (%p179) target = $region12
    $region11: #{tpu_custom_call.1} parent=5 // pred_region
      %s183 = ssub.s32 %s12, 1
      // Predicated region
      $region13: #{tpu_custom_call.1} parent=11 // pred_check
        %p184 = pneg %p59
      $region14: #{tpu_custom_call.1} parent=11 // pred_check_branch
        %186 = sbr.rel (%p184) target = $region16
      $region15: #{tpu_custom_call.1} parent=11 // pred_region
        _
      $region16: #{tpu_custom_call.1} parent=11 // pred_fallthru
        _
      // Predicated region
      $region17: #{tpu_custom_call.1} parent=11 // pred_check
        %p187 = pneg %p80
      $region18: #{tpu_custom_call.1} parent=11 // pred_check_branch
        %189 = sbr.rel (%p187) target = $region20
      $region19: #{tpu_custom_call.1} parent=11 // pred_region
        _
      $region20: #{tpu_custom_call.1} parent=11 // pred_fallthru
        _
      // Predicated region
      $region21: #{tpu_custom_call.1} parent=11 // pred_check
        %p190 = pneg %p101
      $region22: #{tpu_custom_call.1} parent=11 // pred_check_branch
        %192 = sbr.rel (%p190) target = $region24
      $region23: #{tpu_custom_call.1} parent=11 // pred_region
        _
      $region24: #{tpu_custom_call.1} parent=11 // pred_fallthru
        _
      // Predicated region
      $region25: #{tpu_custom_call.1} parent=11 // pred_check
        %p193 = pneg %p122
      $region26: #{tpu_custom_call.1} parent=11 // pred_check_branch
        %195 = sbr.rel (%p193) target = $region28
      $region27: #{tpu_custom_call.1} parent=11 // pred_region
        _
      $region28: #{tpu_custom_call.1} parent=11 // pred_fallthru
        _
      // Predicated region
      $region29: #{tpu_custom_call.1} parent=11 // pred_check
        %p196 = pneg %p143
      $region30: #{tpu_custom_call.1} parent=11 // pred_check_branch
        %198 = sbr.rel (%p196) target = $region32
      $region31: #{tpu_custom_call.1} parent=11 // pred_region
        _
      $region32: #{tpu_custom_call.1} parent=11 // pred_fallthru
        _
    $region12: #{tpu_custom_call.1} parent=5 // pred_fallthru
      _
    %p199 = scmp.lt.s32.totalorder %s12, 2
    // Predicated region
    $region33: #{tpu_custom_call.1} parent=5 // pred_check
      %p200 = pneg %p199
    $region34: #{tpu_custom_call.1} parent=5 // pred_check_branch
      %202 = sbr.rel (%p200) target = $region36
    $region35: #{tpu_custom_call.1} parent=5 // pred_region
      // Predicated region
      $region37: #{tpu_custom_call.1} parent=35 // pred_check
        %p203 = pneg %p32
      $region38: #{tpu_custom_call.1} parent=35 // pred_check_branch
        %205 = sbr.rel (%p203) target = $region40
      $region39: #{tpu_custom_call.1} parent=35 // pred_region
        %p206 = scmp.lt.s32.totalorder %s12, 1
        %s207 = scalar_select %p206, %s12, 1
        %s208 = smul.addr %s207, 4
        %s209 = smul.addr %s208, 8
        %s210 = scalar_lea.vmem %s0, %s209
      $region40: #{tpu_custom_call.1} parent=35 // pred_fallthru
        _
    $region36: #{tpu_custom_call.1} parent=5 // pred_fallthru
      _
    %p211 = scmp.le.s32.totalorder 1, %s12
    %p212 = scmp.lt.s32.totalorder %s12, 3
    %p213 = pnand %p211, %p212
    %p214 = pneg %p213
    // Predicated region
    $region41: #{tpu_custom_call.1} parent=5 // pred_check
      _
    $region42: #{tpu_custom_call.1} parent=5 // pred_check_branch
      %216 = sbr.rel (%p213) target = $region44
    $region43: #{tpu_custom_call.1} parent=5 // pred_region
      %s217 = ssub.s32 %s12, 1
      %p218 = scmp.lt.s32.totalorder %s17, 1
      %s219 = scalar_select %p218, %s17, 1
      %s220 = smul.addr %s219, 4
      %s221 = smul.addr %s220, 8
      %s222 = scalar_lea.vmem %s0, %s221
      %p223 = pneg %p38
      %p224 = pneg %p35
      %p225 = pneg %p59
      %p226 = pneg %p56
      %p227 = pneg %p80
      %p228 = pneg %p77
      %p229 = pneg %p101
      %p230 = pneg %p98
      %p231 = pneg %p122
      %p232 = pneg %p119
      %p233 = pneg %p143
      %p234 = pneg %p140
      %p235 = pneg %p169
      %p236 = pneg %p166
      %p237 = scmp.lt.s32.totalorder %s17, 1
      %s238 = scalar_select %p237, %s17, 1
      %s239 = smul.addr %s238, 4
      %s240 = smul.addr %s239, 8
      %s241 = scalar_lea.vmem %s6, %s240
      %p242 = scmp.lt.s32.totalorder %s17, 1
      %s243 = scalar_select %p242, %s17, 1
      %s244 = smul.addr %s243, 4
      %s245 = smul.addr %s244, 8
      %s246 = scalar_lea.vmem %s0, %s245
      %p247 = scmp.lt.s32.totalorder %s17, 1
      %s248 = scalar_select %p247, %s17, 1
      %s249 = smul.addr %s248, 4
      %s250 = smul.addr %s249, 8
      %s251 = scalar_lea.vmem %s6, %s250
      %v253 = vld [vmem:[%s246] sm:$0xff]
      %v254 = vld [vmem:[%s246 + $0x8] sm:$0xff]
      %v255 = vld [vmem:[%s246 + $0x10] sm:$0xff]
      %v256 = vld [vmem:[%s246 + $0x18] sm:$0xff]
      %257 = vxpose.xlu0.b32.start [1/16] %v253, 128
      %258 = vxpose.xlu0.b32.cont [2/16] %v254, 128
      %259 = vxpose.xlu0.b32.cont [3/16] %v255, 128
      %260 = vxpose.xlu0.b32.cont [4/16] %v256, 128
      %261 = vxpose.xlu0.b32.cont [5/16] 0.0, 128
      %262 = vxpose.xlu0.b32.cont [6/16] 0.0, 128
      %263 = vxpose.xlu0.b32.cont [7/16] 0.0, 128
      %264 = vxpose.xlu0.b32.cont [8/16] 0.0, 128
      %265 = vxpose.xlu0.b32.cont [9/16] 0.0, 128
      %266 = vxpose.xlu0.b32.cont [10/16] 0.0, 128
      %267 = vxpose.xlu0.b32.cont [11/16] 0.0, 128
      %268 = vxpose.xlu0.b32.cont [12/16] 0.0, 128
      %269 = vxpose.xlu0.b32.cont [13/16] 0.0, 128
      %270 = vxpose.xlu0.b32.cont [14/16] 0.0, 128
      %271 = vxpose.xlu0.b32.cont [15/16] 0.0, 128
      %272 = vxpose.xlu0.b32.end [16/16] 0.0, 128
      %v273 = vpop.trf.xlu0
      %v274 = vpop.trf.xlu0
      %v275 = vpop.trf.xlu0
      %v276 = vpop.trf.xlu0
      %v277 = vpop.trf.xlu0
      %v278 = vpop.trf.xlu0
      %v279 = vpop.trf.xlu0
      %v280 = vpop.trf.xlu0
      %v281 = vpop.trf.xlu0
      %v282 = vpop.trf.xlu0
      %v283 = vpop.trf.xlu0
      %v284 = vpop.trf.xlu0
      %v285 = vpop.trf.xlu0
      %v286 = vpop.trf.xlu0
      %v287 = vpop.trf.xlu0
      %v288 = vpop.trf.xlu0
      %v289 = vpack.c.bf16 %v274, %v273
      %v290 = vld [vmem:[%s1] sm:$0xf]
      %v291 = vld [vmem:[%s1 + $0x4] sm:$0xf]
      %v292 = vld [vmem:[%s1 + $0x8] sm:$0xf]
      %v293 = vld [vmem:[%s1 + $0xc] sm:$0xf]
      %v298 = vunpack.c.l.b16 %v290
      %v299 = vunpack.c.l.b16 %v291
      %v300 = vunpack.c.l.b16 %v292
      %v301 = vunpack.c.l.b16 %v293
      %v302 = vpack.c.b16 %v299, %v298
      %v303 = vpack.c.b16 %v301, %v300
      %vm306 = vcmask 261120
      %v308 = vsel %vm306, %v289, 0
      %310 = vmatpush.bf16.msra.mxu0 0
      %311 = vmatpush.bf16.msra.mxu0 0
      %312 = vmatpush.bf16.msra.mxu0 0
      %313 = vmatpush.bf16.msra.mxu0 0
      %314 = vmatpush.bf16.msra.mxu0 0
      %315 = vmatpush.bf16.msra.mxu0 0
      %316 = vmatpush.bf16.msra.mxu0 %v303
      %317 = vmatpush.bf16.msra.mxu0 %v302
      %318 = vmatmul.bf16.gmra.mxu0 %v308
      %v319 = vpop.f32.mrf.mxu0
      %v320 = vadd.f32 0.0, %v319
      %v321 = vpop.f32.mrf.mxu0
      %v322 = vadd.f32 0.0, %v321
      %323 = vdwg.mxu0
      %v324 = vld [vmem:[%s2] sm:$0xf]
      %v325 = vld [vmem:[%s2 + $0x4] sm:$0xf]
      %v326 = vld [vmem:[%s2 + $0x8] sm:$0xf]
      %v327 = vld [vmem:[%s2 + $0xc] sm:$0xf]
      %v328 = vld [vmem:[%s3] sm:$0x1]
      %v330 = vperm.slane %v328, 0
      %v336 = vunpack.c.l.b16 %v324
      %v337 = vunpack.c.l.b16 %v325
      %v338 = vunpack.c.l.b16 %v326
      %v339 = vunpack.c.l.b16 %v327
      %v340 = vpack.c.b16 %v337, %v336
      %v341 = vpack.c.b16 %v339, %v338
      %344 = vmatpush.bf16.msra.mxu0 0
      %345 = vmatpush.bf16.msra.mxu0 0
      %346 = vmatpush.bf16.msra.mxu0 0
      %347 = vmatpush.bf16.msra.mxu0 0
      %348 = vmatpush.bf16.msra.mxu0 0
      %349 = vmatpush.bf16.msra.mxu0 0
      %350 = vmatpush.bf16.msra.mxu0 %v341
      %351 = vmatpush.bf16.msra.mxu0 %v340
      %352 = vmatmul.bf16.gmra.mxu0 %v308
      %v353 = vpop.f32.mrf.mxu0
      %v354 = vadd.f32 %v330, %v353
      %v355 = vpop.f32.mrf.mxu0
      %v356 = vadd.f32 %v330, %v355
      %357 = vdwg.mxu0
      %v358 = vpack.c.bf16 %v322, %v320
      %vm359 = vcmask 64512
      %v361 = vsel %vm359, %v358, 0
      %363 = vmatpush.bf16.xpose.msra.mxu0 0
      %364 = vmatpush.bf16.xpose.msra.mxu0 0
      %365 = vmatpush.bf16.xpose.msra.mxu0 0
      %366 = vmatpush.bf16.xpose.msra.mxu0 0
      %367 = vmatpush.bf16.xpose.msra.mxu0 0
      %368 = vmatpush.bf16.xpose.msra.mxu0 0
      %369 = vmatpush.bf16.xpose.msra.mxu0 0
      %370 = vmatpush.bf16.xpose.msra.mxu0 %v361
      %371 = vmatmul.bf16.gmra.mxu0 %v361
      %v372 = vpop.f32.mrf.mxu0
      %v373 = vadd.f32 0.0, %v372
      %v374 = vpop.f32.mrf.mxu0
      %v375 = vadd.f32 0.0, %v374
      %376 = vdwg.mxu0
      %vm377 = vcmask 130048
      %v378 = vsel %vm377, %v373, -inf
      %v379 = vsel %vm377, %v375, -inf
      %v380 = vmax.f32 %v378, %v379
      %381 = vmax.xlane.f32.xlu0 %v380
      %v382 = vpop.xlane.xlu0 %381
      %v383 = vrot.slane %v382, 4
      %v384 = vmax.f32 %v382, %v383
      %v385 = vrot.slane %v384, 2
      %v386 = vmax.f32 %v384, %v385
      %v387 = vrot.slane %v386, 1
      %v388 = vmax.f32 %v386, %v387
      %s389 = vtos %v388
      %v390 = vstv %s389
      %v391 = vsub.f32 %v373, %v390
      %v392 = vsub.f32 %v375, %v390
      %v393 = vmul.f32 %v391, 1.442695
      %v394 = vpow.pop %v393
      %v395 = vmul.f32 %v392, 1.442695
      %v396 = vpow.pop %v395
      %v397 = vsel %vm377, %v394, 0.0
      %398 = vadd.xlane.f32.xlu0 %v397
      %v399 = vpop.xlane.xlu0 %398
      %v400 = vsel %vm377, %v396, 0.0
      %401 = vadd.xlane.f32.xlu0 %v400
      %v402 = vpop.xlane.xlu0 %401
      %v403 = vrcp.pop %v399
      %v404 = vrcp.pop %v402
      %v405 = vmul.f32 %v354, %v403
      %v406 = vmul.f32 %v356, %v404
      %v407 = vpack.c.bf16 %v406, %v405
      %v408 = vpack.c.bf16 %v396, %v394
      %v410 = vsel %vm377, %v408, 0
      %412 = vmatpush.bf16.msra.mxu0 0
      %413 = vmatpush.bf16.msra.mxu0 0
      %414 = vmatpush.bf16.msra.mxu0 0
      %415 = vmatpush.bf16.msra.mxu0 0
      %416 = vmatpush.bf16.msra.mxu0 0
      %417 = vmatpush.bf16.msra.mxu0 0
      %418 = vmatpush.bf16.msra.mxu0 0
      %419 = vmatpush.bf16.msra.mxu0 %v407
      %420 = vmatmul.bf16.gmra.mxu0 %v410
      %v421 = vpop.f32.mrf.mxu0
      %v422 = vadd.f32 0.0, %v421
      %v423 = vpop.f32.mrf.mxu0
      %v424 = vadd.f32 0.0, %v423
      %425 = vdwg.mxu0
      %v426 = vpack.c.bf16 %v424, %v422
      %v427 = vld [vmem:[%s4] sm:$0xf]
      %v428 = vld [vmem:[%s4 + $0x4] sm:$0xf]
      %v429 = vld [vmem:[%s4 + $0x8] sm:$0xf]
      %v430 = vld [vmem:[%s4 + $0xc] sm:$0xf]
      %v431 = vld [vmem:[%s5] sm:$0x1]
      %v433 = vperm.slane %v431, 0
      %v439 = vunpack.c.l.b16 %v427
      %v440 = vunpack.c.l.b16 %v428
      %v441 = vunpack.c.l.b16 %v429
      %v442 = vunpack.c.l.b16 %v430
      %v443 = vpack.c.b16 %v440, %v439
      %v444 = vpack.c.b16 %v442, %v441
      %v448 = vsel %vm306, %v426, 0
      %450 = vmatpush.bf16.msra.mxu0 0
      %451 = vmatpush.bf16.msra.mxu0 0
      %452 = vmatpush.bf16.msra.mxu0 0
      %453 = vmatpush.bf16.msra.mxu0 0
      %454 = vmatpush.bf16.msra.mxu0 0
      %455 = vmatpush.bf16.msra.mxu0 0
      %456 = vmatpush.bf16.msra.mxu0 %v444
      %457 = vmatpush.bf16.msra.mxu0 %v443
      %458 = vmatmul.bf16.gmra.mxu0 %v448
      %v459 = vpop.f32.mrf.mxu0
      %v460 = vadd.f32 %v433, %v459
      %v461 = vpop.f32.mrf.mxu0
      %v462 = vadd.f32 %v433, %v461
      %463 = vdwg.mxu0
      %v464 = vmax.f32 %v460, 0.0
      %v465 = vmax.f32 %v462, 0.0
      %466 = vxpose.xlu0.b32.start [1/16] %v464, 128
      %467 = vxpose.xlu0.b32.cont [2/16] %v465, 128
      %468 = vxpose.xlu0.b32.cont [3/16] 0.0, 128
      %469 = vxpose.xlu0.b32.cont [4/16] 0.0, 128
      %470 = vxpose.xlu0.b32.cont [5/16] 0.0, 128
      %471 = vxpose.xlu0.b32.cont [6/16] 0.0, 128
      %472 = vxpose.xlu0.b32.cont [7/16] 0.0, 128
      %473 = vxpose.xlu0.b32.cont [8/16] 0.0, 128
      %474 = vxpose.xlu0.b32.cont [9/16] 0.0, 128
      %475 = vxpose.xlu0.b32.cont [10/16] 0.0, 128
      %476 = vxpose.xlu0.b32.cont [11/16] 0.0, 128
      %477 = vxpose.xlu0.b32.cont [12/16] 0.0, 128
      %478 = vxpose.xlu0.b32.cont [13/16] 0.0, 128
      %479 = vxpose.xlu0.b32.cont [14/16] 0.0, 128
      %480 = vxpose.xlu0.b32.cont [15/16] 0.0, 128
      %481 = vxpose.xlu0.b32.end [16/16] 0.0, 128
      %v482 = vpop.trf.xlu0
      %v483 = vpop.trf.xlu0
      %v484 = vpop.trf.xlu0
      %v485 = vpop.trf.xlu0
      %v486 = vpop.trf.xlu0
      %v487 = vpop.trf.xlu0
      %v488 = vpop.trf.xlu0
      %v489 = vpop.trf.xlu0
      %v490 = vpop.trf.xlu0
      %v491 = vpop.trf.xlu0
      %v492 = vpop.trf.xlu0
      %v493 = vpop.trf.xlu0
      %v494 = vpop.trf.xlu0
      %v495 = vpop.trf.xlu0
      %v496 = vpop.trf.xlu0
      %v497 = vpop.trf.xlu0
      %v498 = vadd.f32 %v253, %v482
      %v499 = vadd.f32 %v254, %v483
      %v500 = vadd.f32 %v255, %v484
      %v501 = vadd.f32 %v256, %v485
      %502 = vst.msk [vmem:[%s251] sm:$0xff] %vm377, %v498
      %503 = vst.msk [vmem:[%s251 + $0x8] sm:$0xff] %vm377, %v499
      %504 = vst.msk [vmem:[%s251 + $0x10] sm:$0xff] %vm377, %v500
      %505 = vst.msk [vmem:[%s251 + $0x18] sm:$0xff] %vm377, %v501
      %p506 = scmp.lt.s32.totalorder %s17, 1
      %s507 = scalar_select %p506, %s17, 1
      %s508 = smul.addr %s507, 4
      %s509 = smul.addr %s508, 8
      %s510 = scalar_lea.vmem %s6, %s509
      // Predicated region
      $region45: #{tpu_custom_call.1} parent=43 // pred_check
        %p511 = pneg %p166
      $region46: #{tpu_custom_call.1} parent=43 // pred_check_branch
        %513 = sbr.rel (%p511) target = $region48
      $region47: #{tpu_custom_call.1} parent=43 // pred_region
        _
      $region48: #{tpu_custom_call.1} parent=43 // pred_fallthru
        _
    $region44: #{tpu_custom_call.1} parent=5 // pred_fallthru
      _
    %p514 = scmp.le.s32.totalorder 2, %s12
    // Predicated region
    $region49: #{tpu_custom_call.1} parent=5 // pred_check
      %p515 = pneg %p514
    $region50: #{tpu_custom_call.1} parent=5 // pred_check_branch
      %517 = sbr.rel (%p515) target = $region52
    $region51: #{tpu_custom_call.1} parent=5 // pred_region
      %s518 = ssub.s32 %s12, 2
      // Predicated region
      $region53: #{tpu_custom_call.1} parent=51 // pred_check
        %p519 = pneg %p172
      $region54: #{tpu_custom_call.1} parent=51 // pred_check_branch
        %521 = sbr.rel (%p519) target = $region56
      $region55: #{tpu_custom_call.1} parent=51 // pred_region
        %p522 = scmp.lt.s32.totalorder %s18, 1
        %s523 = scalar_select %p522, %s18, 1
        %s524 = smul.addr %s523, 4
        %s525 = smul.addr %s524, 8
        %s526 = scalar_lea.vmem %s6, %s525
      $region56: #{tpu_custom_call.1} parent=51 // pred_fallthru
        _
    $region52: #{tpu_custom_call.1} parent=5 // pred_fallthru
      _
  $region6: #{tpu_custom_call.1} parent=0 // loop_footer
    %s16 = sadd.s32 1, %s12
  $region7: #{tpu_custom_call.1} parent=0 // loop_footer_branch
    %11 = sbr.rel target = $region3
  $region8: #{tpu_custom_call.1} parent=0 // loop_exit
    _

</llo_original>
